<compile_context>
chip_gen: v5e
topology: v5e:2x2
jax: 0.10.0
libtpu: 0.0.40
codegen_flags: <defaults>
</compile_context>

<pallas_src>
import math
import functools

import jax
import jax.numpy as jnp
from jax.experimental import pallas as pl
from jax.experimental.pallas import tpu as pltpu


# Exact softmax denominator by default (parity with f32 PyTorch reference).
# Set True to use the approximate EUP reciprocal (negligible perf delta here).
APPROX_SOFTMAX = False


def _round_up(x, m):
    return (x + m - 1) // m * m


def _transformer_layer_kernel(
    x_ref,       # (N, d_model)                 f32
    wqkv_ref,    # (3*nhead, d_model, head_dim) bf16  [q heads | k heads | v heads]
    bqkv_ref,    # (3*nhead, 1, head_dim)       f32   (q rows pre-scaled)
    wo_ref,      # (nhead, head_dim, d_model)   bf16
    w1_ref,      # (d_model, d_model)           bf16
    w2_ref,      # (d_model, d_model)           bf16
    wf_ref,      # (d_model, out_pad)           bf16  (zero lane-padding)
    vecs_ref,    # (8, vec_w)                   f32   packed small vectors
    out_ref,     # (N, out_pad)                 f32
    *, nhead: int,
):
    x = x_ref[...]                              # (N, d_model) f32
    n, d_model = x.shape
    out_pad = out_ref.shape[-1]

    # ---- unpack the small vectors (rows of one padded VMEM tile) ----------
    vecs = vecs_ref[...]                        # (8, vec_w) f32
    bo    = vecs[0:1, :d_model]
    b1    = vecs[1:2, :d_model]
    b2    = vecs[2:3, :d_model]
    g1    = vecs[3:4, :d_model]
    beta1 = vecs[4:5, :d_model]
    g2    = vecs[5:6, :d_model]
    beta2 = vecs[6:7, :d_model]
    bf    = vecs[7:8, :out_pad]

    x_bf = x.astype(jnp.bfloat16)

    # ---- batched per-head QKV projection (no activation relayouts) --------
    # (3h, N, d) x (3h, d, hd) -> (3h, N, hd); Q columns/bias pre-scaled by
    # 1/sqrt(head_dim) at prep time.
    x3 = jnp.broadcast_to(x_bf[None, :, :], (3 * nhead, n, d_model))
    qkv = jnp.einsum("hnd,hdf->hnf", x3, wqkv_ref[...],
                     preferred_element_type=jnp.float32) + bqkv_ref[...]
    q3 = qkv[0 * nhead:1 * nhead].astype(jnp.bfloat16)   # (h, N, hd)
    k3 = qkv[1 * nhead:2 * nhead].astype(jnp.bfloat16)   # (h, N, hd)
    v3 = qkv[2 * nhead:3 * nhead].astype(jnp.bfloat16)   # (h, N, hd)

    # ---- multi-head attention (q = k = v = x, no mask) --------------------
    s = jnp.einsum("hqd,hkd->hqk", q3, k3,
                   preferred_element_type=jnp.float32)   # (h, N, N) f32
    s = s - jnp.max(s, axis=-1, keepdims=True)
    p = jnp.exp(s)
    p = p * pl.reciprocal(jnp.sum(p, axis=-1, keepdims=True),
                          approx=APPROX_SOFTMAX)
    o3 = jnp.einsum("hqk,hkd->hqd", p.astype(jnp.bfloat16), v3,
                    preferred_element_type=jnp.float32)  # (h, N, hd) f32

    # ---- output projection; head merge folded into the weight layout ------
    attn = jnp.einsum("hqd,hdm->hqm", o3.astype(jnp.bfloat16), wo_ref[...],
                      preferred_element_type=jnp.float32)      # (h, N, d_model)
    attn = jnp.sum(attn, axis=0) + bo                          # (N, d_model)

    def layer_norm(y, g, b, eps=1e-5):
        mu = jnp.mean(y, axis=-1, keepdims=True)
        var = jnp.mean((y - mu) ** 2, axis=-1, keepdims=True)
        return (y - mu) * jax.lax.rsqrt(var + eps) * g + b

    # ---- residual + norm1 (dropout == identity in eval mode) --------------
    src = layer_norm(x + attn, g1, beta1)

    # ---- feed-forward: linear2(ReLU(linear1(src))) + residual + norm2 -----
    h1 = jnp.maximum(
        jnp.dot(src.astype(jnp.bfloat16), w1_ref[...],
                preferred_element_type=jnp.float32) + b1, 0.0)
    h2 = jnp.dot(h1.astype(jnp.bfloat16), w2_ref[...],
                 preferred_element_type=jnp.float32) + b2
    src = layer_norm(src + h2, g2, beta2)

    # ---- final projection, lane-dense (N, out_pad) store ------------------
    out_ref[...] = (
        jnp.dot(src.astype(jnp.bfloat16), wf_ref[...],
                preferred_element_type=jnp.float32) + bf)


def sinusoidal_pos_emb(t, dim, theta=10000.0):
    # glue: cheap per-call setup done in plain JAX (fused by XLA under jit)
    half = dim // 2
    scale = math.log(theta) / (half - 1)
    freqs = jnp.exp(jnp.arange(half, dtype=jnp.float32) * (-scale))
    emb = t[:, None] * freqs[None, :]
    return jnp.concatenate([jnp.sin(emb), jnp.cos(emb)], axis=-1)


def prepare_params(params, *, time_dim, input_dim, nhead):
    """One-time prep of kernel-ready operands.  Call ONCE, reuse every forward."""
    d_model = time_dim + input_dim
    assert d_model % nhead == 0
    head_dim = d_model // nhead
    scale = 1.0 / math.sqrt(head_dim)

    lane = 128
    out_pad = _round_up(input_dim, lane)
    vec_w = _round_up(max(d_model, input_dim), lane)

    def per_head_in(w):   # (d_model, d_model) -> (nhead, d_model, head_dim)
        w = jnp.asarray(w, jnp.float32).reshape(d_model, nhead, head_dim)
        return jnp.transpose(w, (1, 0, 2))

    # fold the 1/sqrt(head_dim) attention scale into the Q weights & bias
    wq3 = per_head_in(params["wq"]) * scale
    wk3 = per_head_in(params["wk"])
    wv3 = per_head_in(params["wv"])
    wqkv = jnp.concatenate([wq3, wk3, wv3], axis=0).astype(jnp.bfloat16)

    def per_head_bias(b, s=1.0):  # (1, d_model) -> (nhead, 1, head_dim)
        return jnp.asarray(b, jnp.float32).reshape(nhead, 1, head_dim) * s

    bqkv = jnp.concatenate(
        [per_head_bias(params["bq"], scale),
         per_head_bias(params["bk"]),
         per_head_bias(params["bv"])], axis=0)            # (3*nhead, 1, hd) f32

    # concat_h(o_h) @ Wo  ==  sum_h o_h @ Wo[h*hd:(h+1)*hd, :]
    wo3 = jnp.asarray(params["wo"], jnp.float32).reshape(
        nhead, head_dim, d_model).astype(jnp.bfloat16)

    w1 = jnp.asarray(params["w1"], jnp.float32).astype(jnp.bfloat16)
    w2 = jnp.asarray(params["w2"], jnp.float32).astype(jnp.bfloat16)

    wf = jnp.zeros((d_model, out_pad), jnp.bfloat16)
    wf = wf.at[:, :input_dim].set(
        jnp.asarray(params["wf"], jnp.float32).astype(jnp.bfloat16))

    def pad_row(v):
        v = jnp.asarray(v, jnp.float32).reshape(1, -1)
        return jnp.pad(v, ((0, 0), (0, vec_w - v.shape[1])))

    vecs = jnp.concatenate(
        [pad_row(params[name]) for name in
         ("bo", "b1", "b2", "g1", "beta1", "g2", "beta2", "bf")],
        axis=0)                                            # (8, vec_w) f32

    return dict(wqkv=wqkv, bqkv=bqkv, wo=wo3, w1=w1, w2=w2, wf=wf, vecs=vecs)


@functools.partial(jax.jit, static_argnames=("time_dim", "nhead"))
def transformer_encoder_layer(t, src, prep, *, time_dim, nhead):
    # forward-pass glue: t = round(t*100); src = concat([src, pos_emb(t)], dim=1)
    t = jnp.round(t * 100.0)
    x = jnp.concatenate([src, sinusoidal_pos_emb(t, time_dim)], axis=1)
    x = x.astype(jnp.float32)
    n, d_model = x.shape
    input_dim = src.shape[1]
    assert d_model % nhead == 0

    out_pad = prep["wf"].shape[1]                      # lane-dense output width

    args = (x, prep["wqkv"], prep["bqkv"], prep["wo"],
            prep["w1"], prep["w2"], prep["wf"], prep["vecs"])
    vmem = pl.BlockSpec(memory_space=pltpu.MemorySpace.VMEM)

    out_padded = pl.pallas_call(
        functools.partial(_transformer_layer_kernel, nhead=nhead),
        out_shape=jax.ShapeDtypeStruct((n, out_pad), jnp.float32),
        in_specs=[vmem] * len(args),
        out_specs=vmem,
    )(*args)

    return out_padded[:, :input_dim]


if __name__ == "__main__":
    # small, module-consistent shapes
    time_dim, input_dim, nhead = 16, 16, 4
    d_model = time_dim + input_dim        # 32
    N = 8                                 # number of tokens / samples

    key = jax.random.PRNGKey(0)
    ks = jax.random.split(key, 16)

    def w(k, shape, s=0.05):
        return jax.random.normal(k, shape, dtype=jnp.float32) * s

    # deterministic synthetic parameters (weights pre-transposed to (in, out))
    params = dict(
        wq=w(ks[0], (d_model, d_model)),
        wk=w(ks[1], (d_model, d_model)),
        wv=w(ks[2], (d_model, d_model)),
        bq=w(ks[3], (1, d_model)),
        bk=w(ks[4], (1, d_model)),
        bv=w(ks[5], (1, d_model)),
        wo=w(ks[6], (d_model, d_model)),
        bo=w(ks[7], (1, d_model)),
        w1=w(ks[8], (d_model, d_model)),
        b1=w(ks[9], (1, d_model)),
        w2=w(ks[10], (d_model, d_model)),
        b2=w(ks[11], (1, d_model)),
        g1=jnp.ones((1, d_model), jnp.float32),
        beta1=jnp.zeros((1, d_model), jnp.float32),
        g2=jnp.ones((1, d_model), jnp.float32),
        beta2=jnp.zeros((1, d_model), jnp.float32),
        wf=w(ks[12], (d_model, input_dim)),
        bf=w(ks[13], (1, input_dim)),
    )

    t = jax.random.uniform(ks[14], (N,), dtype=jnp.float32)
    src = jax.random.normal(ks[15], (N, input_dim), dtype=jnp.float32)

    # One-time parameter prep (reused across all forward calls).
    prep = prepare_params(params, time_dim=time_dim, input_dim=input_dim,
                          nhead=nhead)
    jax.block_until_ready(prep)

    out = transformer_encoder_layer(t, src, prep, time_dim=time_dim, nhead=nhead)
    jax.block_until_ready(out)
    # call again to exercise the cached-jit / prepped-weight fast path
    out = transformer_encoder_layer(t, src, prep, time_dim=time_dim, nhead=nhead)
    jax.block_until_ready(out)

    assert out.shape == (N, input_dim) and out.dtype == jnp.float32
    assert bool(jnp.all(jnp.isfinite(out)))
    print("KERNEL_OK")
</pallas_src>

<mosaic_0001>
module attributes {stable_mosaic.version = 11 : i64} {
  func.func @_transformer_layer_kernel(%arg0: memref<8x32xf32, #tpu.memory_space<vmem>>, %arg1: memref<12x32x8xbf16, #tpu.memory_space<vmem>>, %arg2: memref<12x1x8xf32, #tpu.memory_space<vmem>>, %arg3: memref<4x8x32xbf16, #tpu.memory_space<vmem>>, %arg4: memref<32x32xbf16, #tpu.memory_space<vmem>>, %arg5: memref<32x32xbf16, #tpu.memory_space<vmem>>, %arg6: memref<32x128xbf16, #tpu.memory_space<vmem>>, %arg7: memref<8x128xf32, #tpu.memory_space<vmem>>, %arg8: memref<8x128xf32, #tpu.memory_space<vmem>>) attributes {dimension_semantics = [], scalar_prefetch = 0 : i64, scratch_operands = 0 : i64, tpu.core_type = #tpu.core_type<tc>} {
    %c0 = arith.constant 0 : index
    %c0_0 = arith.constant 0 : index
    %0 = vector.load %arg0[%c0, %c0_0] : memref<8x32xf32, #tpu.memory_space<vmem>>, vector<8x32xf32>
    %c0_1 = arith.constant 0 : index
    %c0_2 = arith.constant 0 : index
    %1 = vector.load %arg7[%c0_1, %c0_2] : memref<8x128xf32, #tpu.memory_space<vmem>>, vector<8x128xf32>
    %2 = vector.extract_strided_slice %1 {offsets = [0, 0], sizes = [1, 32], strides = [1, 1]} : vector<8x128xf32> to vector<1x32xf32>
    %3 = vector.extract_strided_slice %1 {offsets = [1, 0], sizes = [1, 32], strides = [1, 1]} : vector<8x128xf32> to vector<1x32xf32>
    %4 = vector.extract_strided_slice %1 {offsets = [2, 0], sizes = [1, 32], strides = [1, 1]} : vector<8x128xf32> to vector<1x32xf32>
    %5 = vector.extract_strided_slice %1 {offsets = [3, 0], sizes = [1, 32], strides = [1, 1]} : vector<8x128xf32> to vector<1x32xf32>
    %6 = vector.extract_strided_slice %1 {offsets = [4, 0], sizes = [1, 32], strides = [1, 1]} : vector<8x128xf32> to vector<1x32xf32>
    %7 = vector.extract_strided_slice %1 {offsets = [5, 0], sizes = [1, 32], strides = [1, 1]} : vector<8x128xf32> to vector<1x32xf32>
    %8 = vector.extract_strided_slice %1 {offsets = [6, 0], sizes = [1, 32], strides = [1, 1]} : vector<8x128xf32> to vector<1x32xf32>
    %9 = vector.extract_strided_slice %1 {offsets = [7, 0], sizes = [1, 128], strides = [1, 1]} : vector<8x128xf32> to vector<1x128xf32>
    %10 = arith.truncf %0 : vector<8x32xf32> to vector<8x32xbf16>
    %11 = vector.shape_cast %10 : vector<8x32xbf16> to vector<1x8x32xbf16>
    %12 = vector.shape_cast %11 : vector<1x8x32xbf16> to vector<1x8x32xbf16>
    %13 = vector.broadcast %12 : vector<1x8x32xbf16> to vector<12x8x32xbf16>
    %c0_3 = arith.constant 0 : index
    %c0_4 = arith.constant 0 : index
    %c0_5 = arith.constant 0 : index
    %14 = vector.load %arg1[%c0_3, %c0_4, %c0_5] : memref<12x32x8xbf16, #tpu.memory_space<vmem>>, vector<12x32x8xbf16>
    "tpu.trace_start"() <{level = 10 : i32, message = "hnd,hdf->hnf"}> : () -> ()
    %cst = arith.constant dense<0.000000e+00> : vector<12x8x8xf32>
    %15 = tpu.matmul %13, %14, %cst {dimension_numbers = #tpu.dot_dimension_numbers<[2], [1], [1], [2], [0, 0, 0, 1, 1, 2], [0], [0]>} : vector<12x8x32xbf16>, vector<12x32x8xbf16>, vector<12x8x8xf32> -> vector<12x8x8xf32>
    "tpu.trace_stop"() : () -> ()
    %c0_6 = arith.constant 0 : index
    %c0_7 = arith.constant 0 : index
    %c0_8 = arith.constant 0 : index
    %16 = vector.load %arg2[%c0_6, %c0_7, %c0_8] : memref<12x1x8xf32, #tpu.memory_space<vmem>>, vector<12x1x8xf32>
    %17 = vector.broadcast %16 : vector<12x1x8xf32> to vector<12x8x8xf32>
    %18 = arith.addf %15, %17 : vector<12x8x8xf32>
    %19 = vector.extract_strided_slice %18 {offsets = [0, 0, 0], sizes = [4, 8, 8], strides = [1, 1, 1]} : vector<12x8x8xf32> to vector<4x8x8xf32>
    %20 = arith.truncf %19 : vector<4x8x8xf32> to vector<4x8x8xbf16>
    %21 = vector.extract_strided_slice %18 {offsets = [4, 0, 0], sizes = [4, 8, 8], strides = [1, 1, 1]} : vector<12x8x8xf32> to vector<4x8x8xf32>
    %22 = arith.truncf %21 : vector<4x8x8xf32> to vector<4x8x8xbf16>
    %23 = vector.extract_strided_slice %18 {offsets = [8, 0, 0], sizes = [4, 8, 8], strides = [1, 1, 1]} : vector<12x8x8xf32> to vector<4x8x8xf32>
    %24 = arith.truncf %23 : vector<4x8x8xf32> to vector<4x8x8xbf16>
    "tpu.trace_start"() <{level = 10 : i32, message = "hqd,hkd->hqk"}> : () -> ()
    %cst_9 = arith.constant dense<0.000000e+00> : vector<4x8x8xf32>
    %25 = tpu.matmul %20, %22, %cst_9 {dimension_numbers = #tpu.dot_dimension_numbers<[2], [2], [1], [1], [0, 0, 0, 1, 1, 1], [0], [0]>} : vector<4x8x8xbf16>, vector<4x8x8xbf16>, vector<4x8x8xf32> -> vector<4x8x8xf32>
    "tpu.trace_stop"() : () -> ()
    %cst_10 = arith.constant dense<0xFF800000> : vector<4x8xf32>
    %26 = vector.multi_reduction <maximumf>, %25, %cst_10 [2] : vector<4x8x8xf32> to vector<4x8xf32>
    %27 = vector.shape_cast %26 : vector<4x8xf32> to vector<4x8x1xf32>
    %28 = vector.broadcast %27 : vector<4x8x1xf32> to vector<4x8x8xf32>
    %29 = arith.subf %25, %28 : vector<4x8x8xf32>
    %30 = math.exp %29 : vector<4x8x8xf32>
    %cst_11 = arith.constant dense<0.000000e+00> : vector<4x8xf32>
    %31 = vector.multi_reduction <add>, %30, %cst_11 [2] : vector<4x8x8xf32> to vector<4x8xf32>
    %32 = vector.shape_cast %31 : vector<4x8xf32> to vector<4x8x1xf32>
    %33 = tpu.reciprocal %32 : vector<4x8x1xf32> -> vector<4x8x1xf32>
    %34 = vector.broadcast %33 : vector<4x8x1xf32> to vector<4x8x8xf32>
    %35 = arith.mulf %30, %34 : vector<4x8x8xf32>
    %36 = arith.truncf %35 : vector<4x8x8xf32> to vector<4x8x8xbf16>
    "tpu.trace_start"() <{level = 10 : i32, message = "hqk,hkd->hqd"}> : () -> ()
    %cst_12 = arith.constant dense<0.000000e+00> : vector<4x8x8xf32>
    %37 = tpu.matmul %36, %24, %cst_12 {dimension_numbers = #tpu.dot_dimension_numbers<[2], [1], [1], [2], [0, 0, 0, 1, 1, 2], [0], [0]>} : vector<4x8x8xbf16>, vector<4x8x8xbf16>, vector<4x8x8xf32> -> vector<4x8x8xf32>
    "tpu.trace_stop"() : () -> ()
    %38 = arith.truncf %37 : vector<4x8x8xf32> to vector<4x8x8xbf16>
    %c0_13 = arith.constant 0 : index
    %c0_14 = arith.constant 0 : index
    %c0_15 = arith.constant 0 : index
    %39 = vector.load %arg3[%c0_13, %c0_14, %c0_15] : memref<4x8x32xbf16, #tpu.memory_space<vmem>>, vector<4x8x32xbf16>
    "tpu.trace_start"() <{level = 10 : i32, message = "hqd,hdm->hqm"}> : () -> ()
    %cst_16 = arith.constant dense<0.000000e+00> : vector<4x8x32xf32>
    %40 = tpu.matmul %38, %39, %cst_16 {dimension_numbers = #tpu.dot_dimension_numbers<[2], [1], [1], [2], [0, 0, 0, 1, 1, 2], [0], [0]>} : vector<4x8x8xbf16>, vector<4x8x32xbf16>, vector<4x8x32xf32> -> vector<4x8x32xf32>
    "tpu.trace_stop"() : () -> ()
    %cst_17 = arith.constant dense<0.000000e+00> : vector<8x32xf32>
    %41 = vector.multi_reduction <add>, %40, %cst_17 [0] : vector<4x8x32xf32> to vector<8x32xf32>
    %42 = vector.broadcast %2 : vector<1x32xf32> to vector<8x32xf32>
    %43 = arith.addf %41, %42 : vector<8x32xf32>
    %44 = arith.addf %0, %43 : vector<8x32xf32>
    %cst_18 = arith.constant dense<0.000000e+00> : vector<8xf32>
    %45 = vector.multi_reduction <add>, %44, %cst_18 [1] : vector<8x32xf32> to vector<8xf32>
    %46 = vector.shape_cast %45 : vector<8xf32> to vector<8x1xf32>
    %cst_19 = arith.constant 3.200000e+01 : f32
    %47 = vector.broadcast %cst_19 : f32 to vector<8x1xf32>
    %48 = arith.divf %46, %47 : vector<8x1xf32>
    %49 = vector.broadcast %48 : vector<8x1xf32> to vector<8x32xf32>
    %50 = arith.subf %44, %49 : vector<8x32xf32>
    %51 = arith.mulf %50, %50 : vector<8x32xf32>
    %cst_20 = arith.constant dense<0.000000e+00> : vector<8xf32>
    %52 = vector.multi_reduction <add>, %51, %cst_20 [1] : vector<8x32xf32> to vector<8xf32>
    %53 = vector.shape_cast %52 : vector<8xf32> to vector<8x1xf32>
    %cst_21 = arith.constant 3.200000e+01 : f32
    %54 = vector.broadcast %cst_21 : f32 to vector<8x1xf32>
    %55 = arith.divf %53, %54 : vector<8x1xf32>
    %56 = vector.broadcast %48 : vector<8x1xf32> to vector<8x32xf32>
    %57 = arith.subf %44, %56 : vector<8x32xf32>
    %cst_22 = arith.constant 9.99999974E-6 : f32
    %58 = vector.broadcast %cst_22 : f32 to vector<8x1xf32>
    %59 = arith.addf %55, %58 : vector<8x1xf32>
    %60 = math.rsqrt %59 : vector<8x1xf32>
    %61 = vector.broadcast %60 : vector<8x1xf32> to vector<8x32xf32>
    %62 = arith.mulf %57, %61 : vector<8x32xf32>
    %63 = vector.broadcast %5 : vector<1x32xf32> to vector<8x32xf32>
    %64 = arith.mulf %62, %63 : vector<8x32xf32>
    %65 = vector.broadcast %6 : vector<1x32xf32> to vector<8x32xf32>
    %66 = arith.addf %64, %65 : vector<8x32xf32>
    %67 = arith.truncf %66 : vector<8x32xf32> to vector<8x32xbf16>
    %c0_23 = arith.constant 0 : index
    %c0_24 = arith.constant 0 : index
    %68 = vector.load %arg4[%c0_23, %c0_24] : memref<32x32xbf16, #tpu.memory_space<vmem>>, vector<32x32xbf16>
    %cst_25 = arith.constant dense<0.000000e+00> : vector<8x32xf32>
    %69 = tpu.matmul %67, %68, %cst_25 {dimension_numbers = #tpu.dot_dimension_numbers<[1], [0], [0], [1], [0, 0, 1, 1], [], []>} : vector<8x32xbf16>, vector<32x32xbf16>, vector<8x32xf32> -> vector<8x32xf32>
    %70 = vector.broadcast %3 : vector<1x32xf32> to vector<8x32xf32>
    %71 = arith.addf %69, %70 : vector<8x32xf32>
    %cst_26 = arith.constant 0.000000e+00 : f32
    %72 = vector.broadcast %cst_26 : f32 to vector<8x32xf32>
    %73 = arith.maximumf %71, %72 : vector<8x32xf32>
    %74 = arith.truncf %73 : vector<8x32xf32> to vector<8x32xbf16>
    %c0_27 = arith.constant 0 : index
    %c0_28 = arith.constant 0 : index
    %75 = vector.load %arg5[%c0_27, %c0_28] : memref<32x32xbf16, #tpu.memory_space<vmem>>, vector<32x32xbf16>
    %cst_29 = arith.constant dense<0.000000e+00> : vector<8x32xf32>
    %76 = tpu.matmul %74, %75, %cst_29 {dimension_numbers = #tpu.dot_dimension_numbers<[1], [0], [0], [1], [0, 0, 1, 1], [], []>} : vector<8x32xbf16>, vector<32x32xbf16>, vector<8x32xf32> -> vector<8x32xf32>
    %77 = vector.broadcast %4 : vector<1x32xf32> to vector<8x32xf32>
    %78 = arith.addf %76, %77 : vector<8x32xf32>
    %79 = arith.addf %66, %78 : vector<8x32xf32>
    %cst_30 = arith.constant dense<0.000000e+00> : vector<8xf32>
    %80 = vector.multi_reduction <add>, %79, %cst_30 [1] : vector<8x32xf32> to vector<8xf32>
    %81 = vector.shape_cast %80 : vector<8xf32> to vector<8x1xf32>
    %cst_31 = arith.constant 3.200000e+01 : f32
    %82 = vector.broadcast %cst_31 : f32 to vector<8x1xf32>
    %83 = arith.divf %81, %82 : vector<8x1xf32>
    %84 = vector.broadcast %83 : vector<8x1xf32> to vector<8x32xf32>
    %85 = arith.subf %79, %84 : vector<8x32xf32>
    %86 = arith.mulf %85, %85 : vector<8x32xf32>
    %cst_32 = arith.constant dense<0.000000e+00> : vector<8xf32>
    %87 = vector.multi_reduction <add>, %86, %cst_32 [1] : vector<8x32xf32> to vector<8xf32>
    %88 = vector.shape_cast %87 : vector<8xf32> to vector<8x1xf32>
    %cst_33 = arith.constant 3.200000e+01 : f32
    %89 = vector.broadcast %cst_33 : f32 to vector<8x1xf32>
    %90 = arith.divf %88, %89 : vector<8x1xf32>
    %91 = vector.broadcast %83 : vector<8x1xf32> to vector<8x32xf32>
    %92 = arith.subf %79, %91 : vector<8x32xf32>
    %cst_34 = arith.constant 9.99999974E-6 : f32
    %93 = vector.broadcast %cst_34 : f32 to vector<8x1xf32>
    %94 = arith.addf %90, %93 : vector<8x1xf32>
    %95 = math.rsqrt %94 : vector<8x1xf32>
    %96 = vector.broadcast %95 : vector<8x1xf32> to vector<8x32xf32>
    %97 = arith.mulf %92, %96 : vector<8x32xf32>
    %98 = vector.broadcast %7 : vector<1x32xf32> to vector<8x32xf32>
    %99 = arith.mulf %97, %98 : vector<8x32xf32>
    %100 = vector.broadcast %8 : vector<1x32xf32> to vector<8x32xf32>
    %101 = arith.addf %99, %100 : vector<8x32xf32>
    %102 = arith.truncf %101 : vector<8x32xf32> to vector<8x32xbf16>
    %c0_35 = arith.constant 0 : index
    %c0_36 = arith.constant 0 : index
    %103 = vector.load %arg6[%c0_35, %c0_36] : memref<32x128xbf16, #tpu.memory_space<vmem>>, vector<32x128xbf16>
    %cst_37 = arith.constant dense<0.000000e+00> : vector<8x128xf32>
    %104 = tpu.matmul %102, %103, %cst_37 {dimension_numbers = #tpu.dot_dimension_numbers<[1], [0], [0], [1], [0, 0, 1, 1], [], []>} : vector<8x32xbf16>, vector<32x128xbf16>, vector<8x128xf32> -> vector<8x128xf32>
    %105 = vector.broadcast %9 : vector<1x128xf32> to vector<8x128xf32>
    %106 = arith.addf %104, %105 : vector<8x128xf32>
    %c0_38 = arith.constant 0 : index
    %c0_39 = arith.constant 0 : index
    %107 = vector.load %arg8[%c0_38, %c0_39] : memref<8x128xf32, #tpu.memory_space<vmem>>, vector<8x128xf32>
    tpu.vector_store %arg8[%c0_38, %c0_39], %106 {strides = array<i32>} : memref<8x128xf32, #tpu.memory_space<vmem>>, vector<8x128xf32>,
    return
  }
}

</mosaic_0001>

<llo_original>
// kernel: transformer_encoder_layer.1
$region0: #{transformer_encoder_layer.1}
  #allocation0 [shape = 'u32[]', space=smem, size = 0x4, offset = 0x4, fixed_abs, tag = 'smem constant byte address 0x4 - core index']
  #allocation1 [shape = 'u32[72,128]{1,0:T(1,128)}', space=vmem, size = 0x9000, scoped, tag = 'internal scratch']
  %s0 = inlined_call_operand.vmem [shape: f32[8,32], index: 0, kind: input, shape index: {}]
  %s1 = inlined_call_operand.vmem [shape: bf16[12,32,8], index: 1, kind: input, shape index: {}]
  %s2 = inlined_call_operand.vmem [shape: f32[12,1,8], index: 2, kind: input, shape index: {}]
  %s3 = inlined_call_operand.vmem [shape: bf16[4,8,32], index: 3, kind: input, shape index: {}]
  %s4 = inlined_call_operand.vmem [shape: bf16[32,32], index: 4, kind: input, shape index: {}]
  %s5 = inlined_call_operand.vmem [shape: bf16[32,32], index: 5, kind: input, shape index: {}]
  %s6 = inlined_call_operand.vmem [shape: bf16[32,128], index: 6, kind: input, shape index: {}]
  %s7 = inlined_call_operand.vmem [shape: f32[8,128], index: 7, kind: input, shape index: {}]
  %s8 = inlined_call_operand.hbm [shape: f32[8,128], index: 8, kind: output, shape index: {}]
  %s9 = sld [smem:[#allocation0]]
  $region42: #{transformer_encoder_layer.1} parent=0
    _
  %s11 = ssub.s32 1, %s9
  %s12 = scalar_select 0, %s11, %s9
  $region1: #{transformer_encoder_layer.1} parent=0
    #allocation2 [shape = 'u8[4096]{0}', space=vmem, size = 0x1000, scoped, tag = 'output window, operand 0, single buffered']
    #allocation3 [shape = 's32[1]{0}', space=sflag, size = 0x4, scoped, tag = 'scoped memory for transformer_encoder_layer.1']
    %13 = vsyncpa [#allocation3], 0
    // Predicated region
    $region2: #{transformer_encoder_layer.1} parent=1 // pred_check
      _
    $region3: #{transformer_encoder_layer.1} parent=1 // pred_check_branch
      %15 = sbr.rel (0) target = $region5
    $region4: #{transformer_encoder_layer.1} parent=1 // pred_region
      _
    $region5: #{transformer_encoder_layer.1} parent=1 // pred_fallthru
      _
    // Predicated region
    $region6: #{transformer_encoder_layer.1} parent=1 // pred_check
      _
    $region7: #{transformer_encoder_layer.1} parent=1 // pred_check_branch
      %17 = sbr.rel (0) target = $region9
    $region8: #{transformer_encoder_layer.1} parent=1 // pred_region
      _
    $region9: #{transformer_encoder_layer.1} parent=1 // pred_fallthru
      _
    // Predicated region
    $region10: #{transformer_encoder_layer.1} parent=1 // pred_check
      _
    $region11: #{transformer_encoder_layer.1} parent=1 // pred_check_branch
      %19 = sbr.rel (0) target = $region13
    $region12: #{transformer_encoder_layer.1} parent=1 // pred_region
      _
    $region13: #{transformer_encoder_layer.1} parent=1 // pred_fallthru
      _
    // Predicated region
    $region14: #{transformer_encoder_layer.1} parent=1 // pred_check
      _
    $region15: #{transformer_encoder_layer.1} parent=1 // pred_check_branch
      %21 = sbr.rel (0) target = $region17
    $region16: #{transformer_encoder_layer.1} parent=1 // pred_region
      _
    $region17: #{transformer_encoder_layer.1} parent=1 // pred_fallthru
      _
    // Predicated region
    $region18: #{transformer_encoder_layer.1} parent=1 // pred_check
      _
    $region19: #{transformer_encoder_layer.1} parent=1 // pred_check_branch
      %23 = sbr.rel (0) target = $region21
    $region20: #{transformer_encoder_layer.1} parent=1 // pred_region
      _
    $region21: #{transformer_encoder_layer.1} parent=1 // pred_fallthru
      _
    // Predicated region
    $region22: #{transformer_encoder_layer.1} parent=1 // pred_check
      _
    $region23: #{transformer_encoder_layer.1} parent=1 // pred_check_branch
      %25 = sbr.rel (0) target = $region25
    $region24: #{transformer_encoder_layer.1} parent=1 // pred_region
      _
    $region25: #{transformer_encoder_layer.1} parent=1 // pred_fallthru
      _
    // Predicated region
    $region26: #{transformer_encoder_layer.1} parent=1 // pred_check
      _
    $region27: #{transformer_encoder_layer.1} parent=1 // pred_check_branch
      %27 = sbr.rel (0) target = $region29
    $region28: #{transformer_encoder_layer.1} parent=1 // pred_region
      _
    $region29: #{transformer_encoder_layer.1} parent=1 // pred_fallthru
      _
    // Predicated region
    $region30: #{transformer_encoder_layer.1} parent=1 // pred_check
      _
    $region31: #{transformer_encoder_layer.1} parent=1 // pred_check_branch
      %29 = sbr.rel (0) target = $region33
    $region32: #{transformer_encoder_layer.1} parent=1 // pred_region
      _
    $region33: #{transformer_encoder_layer.1} parent=1 // pred_fallthru
      _
    %v31 = vld [vmem:[%s0] sm:$0xff]
    %v32 = vld [vmem:[%s7] sm:$0xff]
    %v33 = vpack.c.bf16 %v31, %v31
    %v34 = vld [vmem:[%s1] sm:$0xf]
    %v35 = vld [vmem:[%s1 + $0x4] sm:$0xf]
    %v36 = vld [vmem:[%s1 + $0x8] sm:$0xf]
    %v37 = vld [vmem:[%s1 + $0xc] sm:$0xf]
    %v38 = vld [vmem:[%s1 + $0x10] sm:$0xf]
    %v39 = vld [vmem:[%s1 + $0x14] sm:$0xf]
    %v40 = vld [vmem:[%s1 + $0x18] sm:$0xf]
    %v41 = vld [vmem:[%s1 + $0x1c] sm:$0xf]
    %v42 = vld [vmem:[%s1 + $0x20] sm:$0xf]
    %v43 = vld [vmem:[%s1 + $0x24] sm:$0xf]
    %v44 = vld [vmem:[%s1 + $0x28] sm:$0xf]
    %v45 = vld [vmem:[%s1 + $0x2c] sm:$0xf]
    %v46 = vld [vmem:[%s1 + $0x30] sm:$0xf]
    %v47 = vld [vmem:[%s1 + $0x34] sm:$0xf]
    %v48 = vld [vmem:[%s1 + $0x38] sm:$0xf]
    %v49 = vld [vmem:[%s1 + $0x3c] sm:$0xf]
    %v50 = vld [vmem:[%s1 + $0x40] sm:$0xf]
    %v51 = vld [vmem:[%s1 + $0x44] sm:$0xf]
    %v52 = vld [vmem:[%s1 + $0x48] sm:$0xf]
    %v53 = vld [vmem:[%s1 + $0x4c] sm:$0xf]
    %v54 = vld [vmem:[%s1 + $0x50] sm:$0xf]
    %v55 = vld [vmem:[%s1 + $0x54] sm:$0xf]
    %v56 = vld [vmem:[%s1 + $0x58] sm:$0xf]
    %v57 = vld [vmem:[%s1 + $0x5c] sm:$0xf]
    %v58 = vld [vmem:[%s1 + $0x60] sm:$0xf]
    %v59 = vld [vmem:[%s1 + $0x64] sm:$0xf]
    %v60 = vld [vmem:[%s1 + $0x68] sm:$0xf]
    %v61 = vld [vmem:[%s1 + $0x6c] sm:$0xf]
    %v62 = vld [vmem:[%s1 + $0x70] sm:$0xf]
    %v63 = vld [vmem:[%s1 + $0x74] sm:$0xf]
    %v64 = vld [vmem:[%s1 + $0x78] sm:$0xf]
    %v65 = vld [vmem:[%s1 + $0x7c] sm:$0xf]
    %v66 = vld [vmem:[%s1 + $0x80] sm:$0xf]
    %v67 = vld [vmem:[%s1 + $0x84] sm:$0xf]
    %v68 = vld [vmem:[%s1 + $0x88] sm:$0xf]
    %v69 = vld [vmem:[%s1 + $0x8c] sm:$0xf]
    %v70 = vld [vmem:[%s1 + $0x90] sm:$0xf]
    %v71 = vld [vmem:[%s1 + $0x94] sm:$0xf]
    %v72 = vld [vmem:[%s1 + $0x98] sm:$0xf]
    %v73 = vld [vmem:[%s1 + $0x9c] sm:$0xf]
    %v74 = vld [vmem:[%s1 + $0xa0] sm:$0xf]
    %v75 = vld [vmem:[%s1 + $0xa4] sm:$0xf]
    %v76 = vld [vmem:[%s1 + $0xa8] sm:$0xf]
    %v77 = vld [vmem:[%s1 + $0xac] sm:$0xf]
    %v78 = vld [vmem:[%s1 + $0xb0] sm:$0xf]
    %v79 = vld [vmem:[%s1 + $0xb4] sm:$0xf]
    %v80 = vld [vmem:[%s1 + $0xb8] sm:$0xf]
    %v81 = vld [vmem:[%s1 + $0xbc] sm:$0xf]
    %v82 = vld [vmem:[%s2] sm:$0x1]
    %v83 = vld [vmem:[%s2 + $0x1] sm:$0x1]
    %v84 = vld [vmem:[%s2 + $0x2] sm:$0x1]
    %v85 = vld [vmem:[%s2 + $0x3] sm:$0x1]
    %v86 = vld [vmem:[%s2 + $0x4] sm:$0x1]
    %v87 = vld [vmem:[%s2 + $0x5] sm:$0x1]
    %v88 = vld [vmem:[%s2 + $0x6] sm:$0x1]
    %v89 = vld [vmem:[%s2 + $0x7] sm:$0x1]
    %v90 = vld [vmem:[%s2 + $0x8] sm:$0x1]
    %v91 = vld [vmem:[%s2 + $0x9] sm:$0x1]
    %v92 = vld [vmem:[%s2 + $0xa] sm:$0x1]
    %v93 = vld [vmem:[%s2 + $0xb] sm:$0x1]
    %v106 = vperm.slane %v82, 0
    %v107 = vperm.slane %v83, 0
    %v108 = vperm.slane %v84, 0
    %v109 = vperm.slane %v85, 0
    %v110 = vperm.slane %v86, 0
    %v111 = vperm.slane %v87, 0
    %v112 = vperm.slane %v88, 0
    %v113 = vperm.slane %v89, 0
    %v114 = vperm.slane %v90, 0
    %v115 = vperm.slane %v91, 0
    %v116 = vperm.slane %v92, 0
    %v117 = vperm.slane %v93, 0
    %v134 = vunpack.c.l.b16 %v34
    %v135 = vunpack.c.l.b16 %v35
    %v136 = vunpack.c.l.b16 %v36
    %v137 = vunpack.c.l.b16 %v37
    %v138 = vpack.c.b16 %v135, %v134
    %v139 = vpack.c.b16 %v137, %v136
    %vm142 = vcmask 261120
    %v144 = vsel %vm142, %v33, 0
    %146 = vmatpush.bf16.msra.mxu0 0
    %147 = vmatpush.bf16.msra.mxu0 0
    %148 = vmatpush.bf16.msra.mxu0 0
    %149 = vmatpush.bf16.msra.mxu0 0
    %150 = vmatpush.bf16.msra.mxu0 0
    %151 = vmatpush.bf16.msra.mxu0 0
    %152 = vmatpush.bf16.msra.mxu0 %v139
    %153 = vmatpush.bf16.msra.mxu0 %v138
    %154 = vmatmul.bf16.gmra.mxu0 %v144
    %v155 = vpop.f32.mrf.mxu0
    %v156 = vadd.f32 %v106, %v155
    %v157 = vpop.f32.mrf.mxu0
    %158 = vdwg.mxu0
    %v163 = vunpack.c.l.b16 %v38
    %v164 = vunpack.c.l.b16 %v39
    %v165 = vunpack.c.l.b16 %v40
    %v166 = vunpack.c.l.b16 %v41
    %v167 = vpack.c.b16 %v164, %v163
    %v168 = vpack.c.b16 %v166, %v165
    %171 = vmatpush.bf16.msra.mxu0 0
    %172 = vmatpush.bf16.msra.mxu0 0
    %173 = vmatpush.bf16.msra.mxu0 0
    %174 = vmatpush.bf16.msra.mxu0 0
    %175 = vmatpush.bf16.msra.mxu0 0
    %176 = vmatpush.bf16.msra.mxu0 0
    %177 = vmatpush.bf16.msra.mxu0 %v168
    %178 = vmatpush.bf16.msra.mxu0 %v167
    %179 = vmatmul.bf16.gmra.mxu0 %v144
    %v180 = vpop.f32.mrf.mxu0
    %v181 = vadd.f32 %v107, %v180
    %v182 = vpop.f32.mrf.mxu0
    %183 = vdwg.mxu0
    %v188 = vunpack.c.l.b16 %v42
    %v189 = vunpack.c.l.b16 %v43
    %v190 = vunpack.c.l.b16 %v44
    %v191 = vunpack.c.l.b16 %v45
    %v192 = vpack.c.b16 %v189, %v188
    %v193 = vpack.c.b16 %v191, %v190
    %196 = vmatpush.bf16.msra.mxu0 0
    %197 = vmatpush.bf16.msra.mxu0 0
    %198 = vmatpush.bf16.msra.mxu0 0
    %199 = vmatpush.bf16.msra.mxu0 0
    %200 = vmatpush.bf16.msra.mxu0 0
    %201 = vmatpush.bf16.msra.mxu0 0
    %202 = vmatpush.bf16.msra.mxu0 %v193
    %203 = vmatpush.bf16.msra.mxu0 %v192
    %204 = vmatmul.bf16.gmra.mxu0 %v144
    %v205 = vpop.f32.mrf.mxu0
    %v206 = vadd.f32 %v108, %v205
    %v207 = vpop.f32.mrf.mxu0
    %208 = vdwg.mxu0
    %v213 = vunpack.c.l.b16 %v46
    %v214 = vunpack.c.l.b16 %v47
    %v215 = vunpack.c.l.b16 %v48
    %v216 = vunpack.c.l.b16 %v49
    %v217 = vpack.c.b16 %v214, %v213
    %v218 = vpack.c.b16 %v216, %v215
    %221 = vmatpush.bf16.msra.mxu0 0
    %222 = vmatpush.bf16.msra.mxu0 0
    %223 = vmatpush.bf16.msra.mxu0 0
    %224 = vmatpush.bf16.msra.mxu0 0
    %225 = vmatpush.bf16.msra.mxu0 0
    %226 = vmatpush.bf16.msra.mxu0 0
    %227 = vmatpush.bf16.msra.mxu0 %v218
    %228 = vmatpush.bf16.msra.mxu0 %v217
    %229 = vmatmul.bf16.gmra.mxu0 %v144
    %v230 = vpop.f32.mrf.mxu0
    %v231 = vadd.f32 %v109, %v230
    %v232 = vpop.f32.mrf.mxu0
    %233 = vdwg.mxu0
    %v238 = vunpack.c.l.b16 %v50
    %v239 = vunpack.c.l.b16 %v51
    %v240 = vunpack.c.l.b16 %v52
    %v241 = vunpack.c.l.b16 %v53
    %v242 = vpack.c.b16 %v239, %v238
    %v243 = vpack.c.b16 %v241, %v240
    %246 = vmatpush.bf16.msra.mxu0 0
    %247 = vmatpush.bf16.msra.mxu0 0
    %248 = vmatpush.bf16.msra.mxu0 0
    %249 = vmatpush.bf16.msra.mxu0 0
    %250 = vmatpush.bf16.msra.mxu0 0
    %251 = vmatpush.bf16.msra.mxu0 0
    %252 = vmatpush.bf16.msra.mxu0 %v243
    %253 = vmatpush.bf16.msra.mxu0 %v242
    %254 = vmatmul.bf16.gmra.mxu0 %v144
    %v255 = vpop.f32.mrf.mxu0
    %v256 = vadd.f32 %v110, %v255
    %v257 = vpop.f32.mrf.mxu0
    %258 = vdwg.mxu0
    %v263 = vunpack.c.l.b16 %v54
    %v264 = vunpack.c.l.b16 %v55
    %v265 = vunpack.c.l.b16 %v56
    %v266 = vunpack.c.l.b16 %v57
    %v267 = vpack.c.b16 %v264, %v263
    %v268 = vpack.c.b16 %v266, %v265
    %271 = vmatpush.bf16.msra.mxu0 0
    %272 = vmatpush.bf16.msra.mxu0 0
    %273 = vmatpush.bf16.msra.mxu0 0
    %274 = vmatpush.bf16.msra.mxu0 0
    %275 = vmatpush.bf16.msra.mxu0 0
    %276 = vmatpush.bf16.msra.mxu0 0
    %277 = vmatpush.bf16.msra.mxu0 %v268
    %278 = vmatpush.bf16.msra.mxu0 %v267
    %279 = vmatmul.bf16.gmra.mxu0 %v144
    %v280 = vpop.f32.mrf.mxu0
    %v281 = vadd.f32 %v111, %v280
    %v282 = vpop.f32.mrf.mxu0
    %283 = vdwg.mxu0
    %v288 = vunpack.c.l.b16 %v58
    %v289 = vunpack.c.l.b16 %v59
    %v290 = vunpack.c.l.b16 %v60
    %v291 = vunpack.c.l.b16 %v61
    %v292 = vpack.c.b16 %v289, %v288
    %v293 = vpack.c.b16 %v291, %v290
    %296 = vmatpush.bf16.msra.mxu0 0
    %297 = vmatpush.bf16.msra.mxu0 0
    %298 = vmatpush.bf16.msra.mxu0 0
    %299 = vmatpush.bf16.msra.mxu0 0
    %300 = vmatpush.bf16.msra.mxu0 0
    %301 = vmatpush.bf16.msra.mxu0 0
    %302 = vmatpush.bf16.msra.mxu0 %v293
    %303 = vmatpush.bf16.msra.mxu0 %v292
    %304 = vmatmul.bf16.gmra.mxu0 %v144
    %v305 = vpop.f32.mrf.mxu0
    %v306 = vadd.f32 %v112, %v305
    %v307 = vpop.f32.mrf.mxu0
    %308 = vdwg.mxu0
    %v313 = vunpack.c.l.b16 %v62
    %v314 = vunpack.c.l.b16 %v63
    %v315 = vunpack.c.l.b16 %v64
    %v316 = vunpack.c.l.b16 %v65
    %v317 = vpack.c.b16 %v314, %v313
    %v318 = vpack.c.b16 %v316, %v315
    %321 = vmatpush.bf16.msra.mxu0 0
    %322 = vmatpush.bf16.msra.mxu0 0
    %323 = vmatpush.bf16.msra.mxu0 0
    %324 = vmatpush.bf16.msra.mxu0 0
    %325 = vmatpush.bf16.msra.mxu0 0
    %326 = vmatpush.bf16.msra.mxu0 0
    %327 = vmatpush.bf16.msra.mxu0 %v318
    %328 = vmatpush.bf16.msra.mxu0 %v317
    %329 = vmatmul.bf16.gmra.mxu0 %v144
    %v330 = vpop.f32.mrf.mxu0
    %v331 = vadd.f32 %v113, %v330
    %v332 = vpop.f32.mrf.mxu0
    %333 = vdwg.mxu0
    %v338 = vunpack.c.l.b16 %v66
    %v339 = vunpack.c.l.b16 %v67
    %v340 = vunpack.c.l.b16 %v68
    %v341 = vunpack.c.l.b16 %v69
    %v342 = vpack.c.b16 %v339, %v338
    %v343 = vpack.c.b16 %v341, %v340
    %346 = vmatpush.bf16.msra.mxu0 0
    %347 = vmatpush.bf16.msra.mxu0 0
    %348 = vmatpush.bf16.msra.mxu0 0
    %349 = vmatpush.bf16.msra.mxu0 0
    %350 = vmatpush.bf16.msra.mxu0 0
    %351 = vmatpush.bf16.msra.mxu0 0
    %352 = vmatpush.bf16.msra.mxu0 %v343
    %353 = vmatpush.bf16.msra.mxu0 %v342
    %354 = vmatmul.bf16.gmra.mxu0 %v144
    %v355 = vpop.f32.mrf.mxu0
    %v356 = vadd.f32 %v114, %v355
    %v357 = vpop.f32.mrf.mxu0
    %358 = vdwg.mxu0
    %v363 = vunpack.c.l.b16 %v70
    %v364 = vunpack.c.l.b16 %v71
    %v365 = vunpack.c.l.b16 %v72
    %v366 = vunpack.c.l.b16 %v73
    %v367 = vpack.c.b16 %v364, %v363
    %v368 = vpack.c.b16 %v366, %v365
    %371 = vmatpush.bf16.msra.mxu0 0
    %372 = vmatpush.bf16.msra.mxu0 0
    %373 = vmatpush.bf16.msra.mxu0 0
    %374 = vmatpush.bf16.msra.mxu0 0
    %375 = vmatpush.bf16.msra.mxu0 0
    %376 = vmatpush.bf16.msra.mxu0 0
    %377 = vmatpush.bf16.msra.mxu0 %v368
    %378 = vmatpush.bf16.msra.mxu0 %v367
    %379 = vmatmul.bf16.gmra.mxu0 %v144
    %v380 = vpop.f32.mrf.mxu0
    %v381 = vadd.f32 %v115, %v380
    %v382 = vpop.f32.mrf.mxu0
    %383 = vdwg.mxu0
    %v388 = vunpack.c.l.b16 %v74
    %v389 = vunpack.c.l.b16 %v75
    %v390 = vunpack.c.l.b16 %v76
    %v391 = vunpack.c.l.b16 %v77
    %v392 = vpack.c.b16 %v389, %v388
    %v393 = vpack.c.b16 %v391, %v390
    %396 = vmatpush.bf16.msra.mxu0 0
    %397 = vmatpush.bf16.msra.mxu0 0
    %398 = vmatpush.bf16.msra.mxu0 0
    %399 = vmatpush.bf16.msra.mxu0 0
    %400 = vmatpush.bf16.msra.mxu0 0
    %401 = vmatpush.bf16.msra.mxu0 0
    %402 = vmatpush.bf16.msra.mxu0 %v393
    %403 = vmatpush.bf16.msra.mxu0 %v392
    %404 = vmatmul.bf16.gmra.mxu0 %v144
    %v405 = vpop.f32.mrf.mxu0
    %v406 = vadd.f32 %v116, %v405
    %v407 = vpop.f32.mrf.mxu0
    %408 = vdwg.mxu0
    %v413 = vunpack.c.l.b16 %v78
    %v414 = vunpack.c.l.b16 %v79
    %v415 = vunpack.c.l.b16 %v80
    %v416 = vunpack.c.l.b16 %v81
    %v417 = vpack.c.b16 %v414, %v413
    %v418 = vpack.c.b16 %v416, %v415
    %421 = vmatpush.bf16.msra.mxu0 0
    %422 = vmatpush.bf16.msra.mxu0 0
    %423 = vmatpush.bf16.msra.mxu0 0
    %424 = vmatpush.bf16.msra.mxu0 0
    %425 = vmatpush.bf16.msra.mxu0 0
    %426 = vmatpush.bf16.msra.mxu0 0
    %427 = vmatpush.bf16.msra.mxu0 %v418
    %428 = vmatpush.bf16.msra.mxu0 %v417
    %429 = vmatmul.bf16.gmra.mxu0 %v144
    %v430 = vpop.f32.mrf.mxu0
    %v431 = vadd.f32 %v117, %v430
    %v432 = vpop.f32.mrf.mxu0
    %433 = vdwg.mxu0
    %v434 = vpack.c.bf16 %v156, %v156
    %v435 = vpack.c.bf16 %v181, %v181
    %v436 = vpack.c.bf16 %v206, %v206
    %v437 = vpack.c.bf16 %v231, %v231
    %v438 = vpack.c.bf16 %v256, %v256
    %v439 = vpack.c.bf16 %v281, %v281
    %v440 = vpack.c.bf16 %v306, %v306
    %v441 = vpack.c.bf16 %v331, %v331
    %v442 = vpack.c.bf16 %v356, %v356
    %v443 = vpack.c.bf16 %v381, %v381
    %v444 = vpack.c.bf16 %v406, %v406
    %v445 = vpack.c.bf16 %v431, %v431
    %vm446 = vcmask 64512
    %v448 = vsel %vm446, %v434, 0
    %v451 = vsel %vm446, %v438, 0
    %453 = vmatpush.bf16.xpose.msra.mxu0 0
    %454 = vmatpush.bf16.xpose.msra.mxu0 0
    %455 = vmatpush.bf16.xpose.msra.mxu0 0
    %456 = vmatpush.bf16.xpose.msra.mxu0 0
    %457 = vmatpush.bf16.xpose.msra.mxu0 0
    %458 = vmatpush.bf16.xpose.msra.mxu0 0
    %459 = vmatpush.bf16.xpose.msra.mxu0 0
    %460 = vmatpush.bf16.xpose.msra.mxu0 %v451
    %461 = vmatmul.bf16.gmra.mxu0 %v448
    %v462 = vpop.f32.mrf.mxu0
    %v463 = vadd.f32 0.0, %v462
    %v464 = vpop.f32.mrf.mxu0
    %465 = vdwg.mxu0
    %v467 = vsel %vm446, %v435, 0
    %v470 = vsel %vm446, %v439, 0
    %472 = vmatpush.bf16.xpose.msra.mxu0 0
    %473 = vmatpush.bf16.xpose.msra.mxu0 0
    %474 = vmatpush.bf16.xpose.msra.mxu0 0
    %475 = vmatpush.bf16.xpose.msra.mxu0 0
    %476 = vmatpush.bf16.xpose.msra.mxu0 0
    %477 = vmatpush.bf16.xpose.msra.mxu0 0
    %478 = vmatpush.bf16.xpose.msra.mxu0 0
    %479 = vmatpush.bf16.xpose.msra.mxu0 %v470
    %480 = vmatmul.bf16.gmra.mxu0 %v467
    %v481 = vpop.f32.mrf.mxu0
    %v482 = vadd.f32 0.0, %v481
    %v483 = vpop.f32.mrf.mxu0
    %484 = vdwg.mxu0
    %v486 = vsel %vm446, %v436, 0
    %v489 = vsel %vm446, %v440, 0
    %491 = vmatpush.bf16.xpose.msra.mxu0 0
    %492 = vmatpush.bf16.xpose.msra.mxu0 0
    %493 = vmatpush.bf16.xpose.msra.mxu0 0
    %494 = vmatpush.bf16.xpose.msra.mxu0 0
    %495 = vmatpush.bf16.xpose.msra.mxu0 0
    %496 = vmatpush.bf16.xpose.msra.mxu0 0
    %497 = vmatpush.bf16.xpose.msra.mxu0 0
    %498 = vmatpush.bf16.xpose.msra.mxu0 %v489
    %499 = vmatmul.bf16.gmra.mxu0 %v486
    %v500 = vpop.f32.mrf.mxu0
    %v501 = vadd.f32 0.0, %v500
    %v502 = vpop.f32.mrf.mxu0
    %503 = vdwg.mxu0
    %v505 = vsel %vm446, %v437, 0
    %v508 = vsel %vm446, %v441, 0
    %510 = vmatpush.bf16.xpose.msra.mxu0 0
    %511 = vmatpush.bf16.xpose.msra.mxu0 0
    %512 = vmatpush.bf16.xpose.msra.mxu0 0
    %513 = vmatpush.bf16.xpose.msra.mxu0 0
    %514 = vmatpush.bf16.xpose.msra.mxu0 0
    %515 = vmatpush.bf16.xpose.msra.mxu0 0
    %516 = vmatpush.bf16.xpose.msra.mxu0 0
    %517 = vmatpush.bf16.xpose.msra.mxu0 %v508
    %518 = vmatmul.bf16.gmra.mxu0 %v505
    %v519 = vpop.f32.mrf.mxu0
    %v520 = vadd.f32 0.0, %v519
    %v521 = vpop.f32.mrf.mxu0
    %522 = vdwg.mxu0
    %v523 = vsel %vm446, %v463, -inf
    %524 = vmax.xlane.f32.xlu0 %v523
    %v525 = vpop.xlane.xlu0 %524
    %v526 = vsel %vm446, %v482, -inf
    %527 = vmax.xlane.f32.xlu0 %v526
    %v528 = vpop.xlane.xlu0 %527
    %v529 = vsel %vm446, %v501, -inf
    %530 = vmax.xlane.f32.xlu0 %v529
    %v531 = vpop.xlane.xlu0 %530
    %v532 = vsel %vm446, %v520, -inf
    %533 = vmax.xlane.f32.xlu0 %v532
    %v534 = vpop.xlane.xlu0 %533
    %v535 = vsub.f32 %v463, %v525
    %v536 = vsub.f32 %v482, %v528
    %v537 = vsub.f32 %v501, %v531
    %v538 = vsub.f32 %v520, %v534
    %v539 = vmul.f32 %v535, 1.442695
    %v540 = vpow.pop %v539
    %v541 = vmul.f32 %v536, 1.442695
    %v542 = vpow.pop %v541
    %v543 = vmul.f32 %v537, 1.442695
    %v544 = vpow.pop %v543
    %v545 = vmul.f32 %v538, 1.442695
    %v546 = vpow.pop %v545
    %v547 = vsel %vm446, %v540, 0.0
    %548 = vadd.xlane.f32.xlu0 %v547
    %v549 = vpop.xlane.xlu0 %548
    %v550 = vsel %vm446, %v542, 0.0
    %551 = vadd.xlane.f32.xlu0 %v550
    %v552 = vpop.xlane.xlu0 %551
    %v553 = vsel %vm446, %v544, 0.0
    %554 = vadd.xlane.f32.xlu0 %v553
    %v555 = vpop.xlane.xlu0 %554
    %v556 = vsel %vm446, %v546, 0.0
    %557 = vadd.xlane.f32.xlu0 %v556
    %v558 = vpop.xlane.xlu0 %557
    %v559 = vrcp.pop %v549
    %v560 = vmul.f32 %v549, %v559
    %v561 = vsub.f32 1.0, %v560
    %v562 = vmul.f32 %v559, %v561
    %v563 = vadd.f32 %v559, %v562
    %vm564 = vweird.f32 %v549
    %vm565 = vweird.f32 %v559
    %vm566 = vmor %vm564, %vm565
    %v567 = vsel %vm566, %v559, %v563
    %v568 = vand.u32 2147483647, %v549
    %vm569 = vcmp.eq.f32.partialorder %v568, 8.507059e+37
    %v570 = vand.u32 %v549, 2147483648
    %v571 = vor.u32 1.1754944e-38, %v570
    %v572 = vsel %vm569, %v571, %v567
    %v573 = vrcp.pop %v552
    %v574 = vmul.f32 %v552, %v573
    %v575 = vsub.f32 1.0, %v574
    %v576 = vmul.f32 %v573, %v575
    %v577 = vadd.f32 %v573, %v576
    %vm578 = vweird.f32 %v552
    %vm579 = vweird.f32 %v573
    %vm580 = vmor %vm578, %vm579
    %v581 = vsel %vm580, %v573, %v577
    %v582 = vand.u32 2147483647, %v552
    %vm583 = vcmp.eq.f32.partialorder %v582, 8.507059e+37
    %v584 = vand.u32 %v552, 2147483648
    %v585 = vor.u32 1.1754944e-38, %v584
    %v586 = vsel %vm583, %v585, %v581
    %v587 = vrcp.pop %v555
    %v588 = vmul.f32 %v555, %v587
    %v589 = vsub.f32 1.0, %v588
    %v590 = vmul.f32 %v587, %v589
    %v591 = vadd.f32 %v587, %v590
    %vm592 = vweird.f32 %v555
    %vm593 = vweird.f32 %v587
    %vm594 = vmor %vm592, %vm593
    %v595 = vsel %vm594, %v587, %v591
    %v596 = vand.u32 2147483647, %v555
    %vm597 = vcmp.eq.f32.partialorder %v596, 8.507059e+37
    %v598 = vand.u32 %v555, 2147483648
    %v599 = vor.u32 1.1754944e-38, %v598
    %v600 = vsel %vm597, %v599, %v595
    %v601 = vrcp.pop %v558
    %v602 = vmul.f32 %v558, %v601
    %v603 = vsub.f32 1.0, %v602
    %v604 = vmul.f32 %v601, %v603
    %v605 = vadd.f32 %v601, %v604
    %vm606 = vweird.f32 %v558
    %vm607 = vweird.f32 %v601
    %vm608 = vmor %vm606, %vm607
    %v609 = vsel %vm608, %v601, %v605
    %v610 = vand.u32 2147483647, %v558
    %vm611 = vcmp.eq.f32.partialorder %v610, 8.507059e+37
    %v612 = vand.u32 %v558, 2147483648
    %v613 = vor.u32 1.1754944e-38, %v612
    %v614 = vsel %vm611, %v613, %v609
    %v615 = vmul.f32 %v540, %v572
    %v616 = vmul.f32 %v542, %v586
    %v617 = vmul.f32 %v544, %v600
    %v618 = vmul.f32 %v546, %v614
    %v619 = vpack.c.bf16 %v615, %v615
    %v620 = vpack.c.bf16 %v616, %v616
    %v621 = vpack.c.bf16 %v617, %v617
    %v622 = vpack.c.bf16 %v618, %v618
    %v624 = vsel %vm446, %v619, 0
    %vm626 = vcmask 1043456
    %v628 = vsel %vm626, %v442, 0
    %630 = vmatpush.bf16.msra.mxu0 0
    %631 = vmatpush.bf16.msra.mxu0 0
    %632 = vmatpush.bf16.msra.mxu0 0
    %633 = vmatpush.bf16.msra.mxu0 0
    %634 = vmatpush.bf16.msra.mxu0 0
    %635 = vmatpush.bf16.msra.mxu0 0
    %636 = vmatpush.bf16.msra.mxu0 0
    %637 = vmatpush.bf16.msra.mxu0 %v628
    %638 = vmatmul.bf16.gmra.mxu0 %v624
    %v639 = vpop.f32.mrf.mxu0
    %v640 = vadd.f32 0.0, %v639
    %v641 = vpop.f32.mrf.mxu0
    %642 = vdwg.mxu0
    %v644 = vsel %vm446, %v620, 0
    %v647 = vsel %vm626, %v443, 0
    %649 = vmatpush.bf16.msra.mxu0 0
    %650 = vmatpush.bf16.msra.mxu0 0
    %651 = vmatpush.bf16.msra.mxu0 0
    %652 = vmatpush.bf16.msra.mxu0 0
    %653 = vmatpush.bf16.msra.mxu0 0
    %654 = vmatpush.bf16.msra.mxu0 0
    %655 = vmatpush.bf16.msra.mxu0 0
    %656 = vmatpush.bf16.msra.mxu0 %v647
    %657 = vmatmul.bf16.gmra.mxu0 %v644
    %v658 = vpop.f32.mrf.mxu0
    %v659 = vadd.f32 0.0, %v658
    %v660 = vpop.f32.mrf.mxu0
    %661 = vdwg.mxu0
    %v663 = vsel %vm446, %v621, 0
    %v666 = vsel %vm626, %v444, 0
    %668 = vmatpush.bf16.msra.mxu0 0
    %669 = vmatpush.bf16.msra.mxu0 0
    %670 = vmatpush.bf16.msra.mxu0 0
    %671 = vmatpush.bf16.msra.mxu0 0
    %672 = vmatpush.bf16.msra.mxu0 0
    %673 = vmatpush.bf16.msra.mxu0 0
    %674 = vmatpush.bf16.msra.mxu0 0
    %675 = vmatpush.bf16.msra.mxu0 %v666
    %676 = vmatmul.bf16.gmra.mxu0 %v663
    %v677 = vpop.f32.mrf.mxu0
    %v678 = vadd.f32 0.0, %v677
    %v679 = vpop.f32.mrf.mxu0
    %680 = vdwg.mxu0
    %v682 = vsel %vm446, %v622, 0
    %v685 = vsel %vm626, %v445, 0
    %687 = vmatpush.bf16.msra.mxu0 0
    %688 = vmatpush.bf16.msra.mxu0 0
    %689 = vmatpush.bf16.msra.mxu0 0
    %690 = vmatpush.bf16.msra.mxu0 0
    %691 = vmatpush.bf16.msra.mxu0 0
    %692 = vmatpush.bf16.msra.mxu0 0
    %693 = vmatpush.bf16.msra.mxu0 0
    %694 = vmatpush.bf16.msra.mxu0 %v685
    %695 = vmatmul.bf16.gmra.mxu0 %v682
    %v696 = vpop.f32.mrf.mxu0
    %v697 = vadd.f32 0.0, %v696
    %v698 = vpop.f32.mrf.mxu0
    %699 = vdwg.mxu0
    %v700 = vpack.c.bf16 %v640, %v640
    %v701 = vpack.c.bf16 %v659, %v659
    %v702 = vpack.c.bf16 %v678, %v678
    %v703 = vpack.c.bf16 %v697, %v697
    %v704 = vld [vmem:[%s3] sm:$0xf]
    %v705 = vld [vmem:[%s3 + $0x4] sm:$0xf]
    %v706 = vld [vmem:[%s3 + $0x8] sm:$0xf]
    %v707 = vld [vmem:[%s3 + $0xc] sm:$0xf]
    %v709 = vsel %vm446, %v700, 0
    %v712 = vsel %vm626, %v704, 0
    %714 = vmatpush.bf16.msra.mxu0 0
    %715 = vmatpush.bf16.msra.mxu0 0
    %716 = vmatpush.bf16.msra.mxu0 0
    %717 = vmatpush.bf16.msra.mxu0 0
    %718 = vmatpush.bf16.msra.mxu0 0
    %719 = vmatpush.bf16.msra.mxu0 0
    %720 = vmatpush.bf16.msra.mxu0 0
    %721 = vmatpush.bf16.msra.mxu0 %v712
    %722 = vmatmul.bf16.gmra.mxu0 %v709
    %v723 = vpop.f32.mrf.mxu0
    %v724 = vadd.f32 0.0, %v723
    %v725 = vpop.f32.mrf.mxu0
    %726 = vdwg.mxu0
    %v728 = vsel %vm446, %v701, 0
    %v731 = vsel %vm626, %v705, 0
    %733 = vmatpush.bf16.msra.mxu0 0
    %734 = vmatpush.bf16.msra.mxu0 0
    %735 = vmatpush.bf16.msra.mxu0 0
    %736 = vmatpush.bf16.msra.mxu0 0
    %737 = vmatpush.bf16.msra.mxu0 0
    %738 = vmatpush.bf16.msra.mxu0 0
    %739 = vmatpush.bf16.msra.mxu0 0
    %740 = vmatpush.bf16.msra.mxu0 %v731
    %741 = vmatmul.bf16.gmra.mxu0 %v728
    %v742 = vpop.f32.mrf.mxu0
    %v743 = vadd.f32 0.0, %v742
    %v744 = vpop.f32.mrf.mxu0
    %745 = vdwg.mxu0
    %v747 = vsel %vm446, %v702, 0
    %v750 = vsel %vm626, %v706, 0
    %752 = vmatpush.bf16.msra.mxu0 0
    %753 = vmatpush.bf16.msra.mxu0 0
    %754 = vmatpush.bf16.msra.mxu0 0
    %755 = vmatpush.bf16.msra.mxu0 0
    %756 = vmatpush.bf16.msra.mxu0 0
    %757 = vmatpush.bf16.msra.mxu0 0
    %758 = vmatpush.bf16.msra.mxu0 0
    %759 = vmatpush.bf16.msra.mxu0 %v750
    %760 = vmatmul.bf16.gmra.mxu0 %v747
    %v761 = vpop.f32.mrf.mxu0
    %v762 = vadd.f32 0.0, %v761
    %v763 = vpop.f32.mrf.mxu0
    %764 = vdwg.mxu0
    %v766 = vsel %vm446, %v703, 0
    %v769 = vsel %vm626, %v707, 0
    %771 = vmatpush.bf16.msra.mxu0 0
    %772 = vmatpush.bf16.msra.mxu0 0
    %773 = vmatpush.bf16.msra.mxu0 0
    %774 = vmatpush.bf16.msra.mxu0 0
    %775 = vmatpush.bf16.msra.mxu0 0
    %776 = vmatpush.bf16.msra.mxu0 0
    %777 = vmatpush.bf16.msra.mxu0 0
    %778 = vmatpush.bf16.msra.mxu0 %v769
    %779 = vmatmul.bf16.gmra.mxu0 %v766
    %v780 = vpop.f32.mrf.mxu0
    %v781 = vadd.f32 0.0, %v780
    %v782 = vpop.f32.mrf.mxu0
    %783 = vdwg.mxu0
    %v784 = vsel %vm142, %v724, 0.0
    %v785 = vsel %vm142, %v743, 0.0
    %v786 = vadd.f32 %v784, %v785
    %v787 = vsel %vm142, %v762, 0.0
    %v788 = vadd.f32 %v786, %v787
    %v789 = vsel %vm142, %v781, 0.0
    %v790 = vadd.f32 %v788, %v789
    %v791 = vperm.slane %v32, 0
    %v792 = vadd.f32 %v790, %v791
    %v793 = vadd.f32 %v31, %v792
    %v794 = vsel %vm142, %v793, 0.0
    %795 = vadd.xlane.f32.xlu0 %v794
    %v796 = vpop.xlane.xlu0 %795
    %v797 = vrcp.pop 32.0
    %v798 = vmul.f32 32.0, %v797
    %v799 = vsub.f32 1.0, %v798
    %v800 = vmul.f32 %v797, %v799
    %v801 = vadd.f32 %v797, %v800
    %vm802 = vweird.f32 %v797
    %v803 = vsel %vm802, %v797, %v801
    %v804 = vmul.f32 %v796, %v803
    %v805 = vsub.f32 %v793, %v804
    %v806 = vmul.f32 %v805, %v805
    %v807 = vsel %vm142, %v806, 0.0
    %808 = vadd.xlane.f32.xlu0 %v807
    %v809 = vpop.xlane.xlu0 %808
    %v810 = vmul.f32 %v809, %v803
    %v811 = vadd.f32 %v810, 1e-05
    %v812 = vrsqrt.pop %v811
    %v813 = vmul.f32 %v812, %v811
    %v814 = vmul.f32 %v813, %v812
    %v815 = vmul.f32 0.5, %v814
    %v816 = vsub.f32 1.5, %v815
    %v817 = vmul.f32 %v812, %v816
    %vm818 = vweird.f32 %v811
    %vm819 = vweird.f32 %v812
    %vm820 = vmor %vm818, %vm819
    %v821 = vsel %vm820, %v812, %v817
    %v822 = vmul.f32 %v805, %v821
    %v823 = vperm.slane %v32, 3
    %v824 = vmul.f32 %v822, %v823
    %v825 = vperm.slane %v32, 4
    %v826 = vadd.f32 %v824, %v825
    %v827 = vpack.c.bf16 %v826, %v826
    %v828 = vld [vmem:[%s4] sm:$0xf]
    %v829 = vld [vmem:[%s4 + $0x4] sm:$0xf]
    %v830 = vld [vmem:[%s4 + $0x8] sm:$0xf]
    %v831 = vld [vmem:[%s4 + $0xc] sm:$0xf]
    %v832 = vperm.slane %v32, 1
    %v837 = vunpack.c.l.b16 %v828
    %v838 = vunpack.c.l.b16 %v829
    %v839 = vunpack.c.l.b16 %v830
    %v840 = vunpack.c.l.b16 %v831
    %v841 = vpack.c.b16 %v838, %v837
    %v842 = vpack.c.b16 %v840, %v839
    %v846 = vsel %vm142, %v827, 0
    %848 = vmatpush.bf16.msra.mxu0 0
    %849 = vmatpush.bf16.msra.mxu0 0
    %850 = vmatpush.bf16.msra.mxu0 0
    %851 = vmatpush.bf16.msra.mxu0 0
    %852 = vmatpush.bf16.msra.mxu0 0
    %853 = vmatpush.bf16.msra.mxu0 0
    %854 = vmatpush.bf16.msra.mxu0 %v842
    %855 = vmatpush.bf16.msra.mxu0 %v841
    %856 = vmatmul.bf16.gmra.mxu0 %v846
    %v857 = vpop.f32.mrf.mxu0
    %v858 = vadd.f32 %v832, %v857
    %v859 = vpop.f32.mrf.mxu0
    %860 = vdwg.mxu0
    %v861 = vmax.f32 %v858, 0.0
    %v862 = vpack.c.bf16 %v861, %v861
    %v863 = vld [vmem:[%s5] sm:$0xf]
    %v864 = vld [vmem:[%s5 + $0x4] sm:$0xf]
    %v865 = vld [vmem:[%s5 + $0x8] sm:$0xf]
    %v866 = vld [vmem:[%s5 + $0xc] sm:$0xf]
    %v867 = vperm.slane %v32, 2
    %v872 = vunpack.c.l.b16 %v863
    %v873 = vunpack.c.l.b16 %v864
    %v874 = vunpack.c.l.b16 %v865
    %v875 = vunpack.c.l.b16 %v866
    %v876 = vpack.c.b16 %v873, %v872
    %v877 = vpack.c.b16 %v875, %v874
    %v881 = vsel %vm142, %v862, 0
    %883 = vmatpush.bf16.msra.mxu0 0
    %884 = vmatpush.bf16.msra.mxu0 0
    %885 = vmatpush.bf16.msra.mxu0 0
    %886 = vmatpush.bf16.msra.mxu0 0
    %887 = vmatpush.bf16.msra.mxu0 0
    %888 = vmatpush.bf16.msra.mxu0 0
    %889 = vmatpush.bf16.msra.mxu0 %v877
    %890 = vmatpush.bf16.msra.mxu0 %v876
    %891 = vmatmul.bf16.gmra.mxu0 %v881
    %v892 = vpop.f32.mrf.mxu0
    %v893 = vadd.f32 %v867, %v892
    %v894 = vpop.f32.mrf.mxu0
    %895 = vdwg.mxu0
    %v896 = vadd.f32 %v826, %v893
    %v897 = vsel %vm142, %v896, 0.0
    %898 = vadd.xlane.f32.xlu0 %v897
    %v899 = vpop.xlane.xlu0 %898
    %v900 = vmul.f32 %v899, %v803
    %v901 = vsub.f32 %v896, %v900
    %v902 = vmul.f32 %v901, %v901
    %v903 = vsel %vm142, %v902, 0.0
    %904 = vadd.xlane.f32.xlu0 %v903
    %v905 = vpop.xlane.xlu0 %904
    %v906 = vmul.f32 %v905, %v803
    %v907 = vadd.f32 %v906, 1e-05
    %v908 = vrsqrt.pop %v907
    %v909 = vmul.f32 %v908, %v907
    %v910 = vmul.f32 %v909, %v908
    %v911 = vmul.f32 0.5, %v910
    %v912 = vsub.f32 1.5, %v911
    %v913 = vmul.f32 %v908, %v912
    %vm914 = vweird.f32 %v907
    %vm915 = vweird.f32 %v908
    %vm916 = vmor %vm914, %vm915
    %v917 = vsel %vm916, %v908, %v913
    %v918 = vmul.f32 %v901, %v917
    %v919 = vperm.slane %v32, 5
    %v920 = vmul.f32 %v918, %v919
    %v921 = vperm.slane %v32, 6
    %v922 = vadd.f32 %v920, %v921
    %v923 = vpack.c.bf16 %v922, %v922
    %v924 = vld [vmem:[%s6] sm:$0xf]
    %v925 = vld [vmem:[%s6 + $0x4] sm:$0xf]
    %v926 = vld [vmem:[%s6 + $0x8] sm:$0xf]
    %v927 = vld [vmem:[%s6 + $0xc] sm:$0xf]
    %v928 = vperm.slane %v32, 7
    %v933 = vunpack.c.l.b16 %v924
    %v934 = vunpack.c.l.b16 %v925
    %v935 = vunpack.c.l.b16 %v926
    %v936 = vunpack.c.l.b16 %v927
    %v937 = vpack.c.b16 %v934, %v933
    %v938 = vpack.c.b16 %v936, %v935
    %v942 = vsel %vm142, %v923, 0
    %944 = vmatpush.bf16.msra.mxu0 0
    %945 = vmatpush.bf16.msra.mxu0 0
    %946 = vmatpush.bf16.msra.mxu0 0
    %947 = vmatpush.bf16.msra.mxu0 0
    %948 = vmatpush.bf16.msra.mxu0 0
    %949 = vmatpush.bf16.msra.mxu0 0
    %950 = vmatpush.bf16.msra.mxu0 %v938
    %951 = vmatpush.bf16.msra.mxu0 %v937
    %952 = vmatmul.bf16.gmra.mxu0 %v942
    %v953 = vpop.f32.mrf.mxu0
    %v954 = vadd.f32 %v928, %v953
    %v955 = vpop.f32.mrf.mxu0
    %956 = vdwg.mxu0
    %957 = vst [vmem:[#allocation2] sm:$0xff] %v954
    // Predicated region
    $region34: #{transformer_encoder_layer.1} parent=1 // pred_check
      _
    $region35: #{transformer_encoder_layer.1} parent=1 // pred_check_branch
      %959 = sbr.rel (0) target = $region37
    $region36: #{transformer_encoder_layer.1} parent=1 // pred_region
      %961 = vsyncadd [#allocation3], 0
      %s963 = sshll.u32 [#allocation2], 4
      %s964 = int_to_ptr.vmem [resolvable:$true] %s963
      %s965 = sshll.u32 %s8, 4
      %s966 = int_to_ptr.hbm [resolvable:$true] %s965
      %968 = dma.vmem_to_hbm [thread:$0]  %s964, 128, %s966, [#allocation3]
    $region37: #{transformer_encoder_layer.1} parent=1 // pred_fallthru
      _
    // Predicated region
    $region38: #{transformer_encoder_layer.1} parent=1 // pred_check
      _
    $region39: #{transformer_encoder_layer.1} parent=1 // pred_check_branch
      %970 = sbr.rel (0) target = $region41
    $region40: #{transformer_encoder_layer.1} parent=1 // pred_region
      %972 = dma.done [#allocation3], 128
    $region41: #{transformer_encoder_layer.1} parent=1 // pred_fallthru
      _
    %973 = vsyncpa [#allocation3], 1

</llo_original>
